<compile_context>
chip_gen: v5e
topology: v5e:2x2
jax: 0.10.0
libtpu: 0.0.40
codegen_flags: <defaults>
</compile_context>

<pallas_src>
import math
from functools import partial

import jax
import jax.numpy as jnp
from jax.experimental import pallas as pl
from jax.experimental.pallas import tpu as pltpu

_LANE = 128


def _round_up(v, m):
    return ((v + m - 1) // m) * m


def _gcn_kernel(x_ref, adj_ref, w1_ref, w2_ref, out_ref):
    # x_ref   : (B, N, Fin)        raw input (model dtype, e.g. f32)
    # adj_ref : (N, N)             compute dtype (bf16 by default)
    # w1_ref  : (B*Fin, B*Fmid)    block-diagonal kron(I_B, W1), compute dtype
    # w2_ref  : (B*Fmid, P)        block-diagonal kron(I_B, W2), zero-padded to
    #                              P = round_up(B*Fout, 128) lanes
    # out_ref : (N, P)             f32 lane-dense slab; wrapper unpacks it
    B, N, Fin = x_ref.shape
    cdt = w1_ref.dtype  # MXU-operand dtype (bf16 by default)

    adj = adj_ref[...]
    w1_bd = w1_ref[...]
    w2_bd = w2_ref[...]

    # gc1, lane-packed: s1[:, b*Fmid:(b+1)*Fmid] = x[b] @ W1.
    # Unrolled sum over batch row-blocks of the block-diagonal W1; off-block
    # columns are zero so the sum equals the packed support exactly, and no
    # in-kernel transpose/concatenate is needed.
    s1 = jnp.dot(x_ref[0].astype(cdt), w1_bd[:Fin, :],
                 preferred_element_type=jnp.float32)                     # (N, B*Fmid)
    for b in range(1, B):
        s1 = s1 + jnp.dot(x_ref[b].astype(cdt),
                          w1_bd[b * Fin:(b + 1) * Fin, :],
                          preferred_element_type=jnp.float32)

    # h = adj @ support (adj shared across the lane-packed batch); ReLU in f32
    # (keep elementwise math f32 -- v5e VPU has no bf16).
    h = jnp.dot(adj, s1.astype(cdt), preferred_element_type=jnp.float32)
    h = jnp.maximum(h, 0.0)

    # Dropout -> identity (eval mode).
    # TODO(synk): training-mode dropout needs pltpu.prng_seed/prng_random_bits.

    # gc2, reassociated: out = (adj @ h) @ W2 (exact; Fmid < Fout so the NxN
    # contraction runs against the narrower operand). W2_bd is lane-padded so
    # the output store is a full, unmasked (N, P) slab.
    t = jnp.dot(adj, h.astype(cdt), preferred_element_type=jnp.float32)   # (N, B*Fmid)
    out = jnp.dot(t.astype(cdt), w2_bd, preferred_element_type=jnp.float32)  # (N, P)

    out_ref[...] = out.astype(out_ref.dtype)


def prepare_gcn_params(adj, w1, w2, batch_size, compute_dtype=jnp.bfloat16):
    """One-time packing of the model constants (call once, reuse every forward).

    Builds the block-diagonal kron(I_B, W) weights (fine for small B; grows as
    B^2 -- switch to sublane packing for large B), zero-pads W2 columns so the
    kernel's output slab is lane-dense (multiple of 128), and casts everything
    to the MXU compute dtype.
    """
    Fin, Fmid = w1.shape
    Fout = w2.shape[1]
    assert adj.shape[0] == adj.shape[1]

    eye_b = jnp.eye(batch_size, dtype=w1.dtype)
    w1_bd = jnp.kron(eye_b, w1)                                  # (B*Fin, B*Fmid)
    w2_bd = jnp.kron(eye_b, w2)                                  # (B*Fmid, B*Fout)
    pad = _round_up(batch_size * Fout, _LANE) - batch_size * Fout
    w2_bd = jnp.pad(w2_bd, ((0, 0), (0, pad)))                   # (B*Fmid, P)

    return {
        "adj": adj.astype(compute_dtype),
        "w1_bd": w1_bd.astype(compute_dtype),
        "w2_bd": w2_bd.astype(compute_dtype),
        "fout": int(Fout),
    }


@partial(jax.jit, static_argnames=("fout",))
def _gcn_forward_impl(x, adj_c, w1_bd, w2_bd, *, fout):
    B, N, Fin = x.shape
    P = w2_bd.shape[1]

    slab = pl.pallas_call(
        _gcn_kernel,
        out_shape=jax.ShapeDtypeStruct((N, P), x.dtype),
        # No grid: single invocation, whole arrays resident in VMEM
        # (everything here is a few KiB; no pipeline / double-buffering).
        in_specs=[
            pl.BlockSpec(memory_space=pltpu.MemorySpace.VMEM),  # x (B, N, Fin)
            pl.BlockSpec(memory_space=pltpu.MemorySpace.VMEM),  # adj (N, N)
            pl.BlockSpec(memory_space=pltpu.MemorySpace.VMEM),  # w1_bd
            pl.BlockSpec(memory_space=pltpu.MemorySpace.VMEM),  # w2_bd (padded)
        ],
        out_specs=pl.BlockSpec(memory_space=pltpu.MemorySpace.VMEM),
    )(x, adj_c, w1_bd, w2_bd)

    # Unpack lanes back to [B, N, Fout] (wrapper-side layout plumbing only).
    out = slab[:, : B * fout].reshape(N, B, fout)
    return jnp.transpose(out, (1, 0, 2))


def gcn_forward(x, params):
    """Per-inference path: raw x + cached packed params -> [B, N, Fout]."""
    return _gcn_forward_impl(x, params["adj"], params["w1_bd"], params["w2_bd"],
                             fout=params["fout"])


def gcn_reference(x, adj, w1, w2):
    """Pure-JAX f32 reference mirroring the PyTorch forward (eval mode)."""
    support = jnp.einsum("bnf,fm->bnm", x, w1)
    h = jnp.einsum("nk,bkm->bnm", adj, support)
    h = jnp.maximum(h, 0.0)
    support = jnp.einsum("bnf,fm->bnm", h, w2)
    return jnp.einsum("nk,bkm->bnm", adj, support)


if __name__ == "__main__":
    # Small shapes consistent with the module's forward:
    #   classNum (graph nodes) = 8, imageFeatureDim = 32,
    #   intermediaDim = 16, outputDim = 32, batch = 2.
    B, N = 2, 8
    F_IN, F_MID, F_OUT = 32, 16, 32

    key = jax.random.PRNGKey(0)
    kx, kadj, kw1, kw2 = jax.random.split(key, 4)

    x = jax.random.normal(kx, (B, N, F_IN), dtype=jnp.float32)
    adj = jax.random.uniform(kadj, (N, N), dtype=jnp.float32)

    # Deterministic init matching GraphConvolution.reset_parameters:
    # uniform(-stdv, stdv) with stdv = 1/sqrt(out_features).
    stdv1 = 1.0 / math.sqrt(F_MID)
    stdv2 = 1.0 / math.sqrt(F_OUT)
    w1 = jax.random.uniform(kw1, (F_IN, F_MID), dtype=jnp.float32,
                            minval=-stdv1, maxval=stdv1)
    w2 = jax.random.uniform(kw2, (F_MID, F_OUT), dtype=jnp.float32,
                            minval=-stdv2, maxval=stdv2)

    ref = gcn_reference(x, adj, w1, w2)

    # f32 compute path: exercises the block-diagonal packing, reassociation
    # and lane-padding exactly (tight tolerance).
    params_f32 = prepare_gcn_params(adj, w1, w2, batch_size=B,
                                    compute_dtype=jnp.float32)
    out_f32 = jax.block_until_ready(gcn_forward(x, params_f32))
    assert out_f32.shape == (B, N, F_OUT)
    assert jnp.allclose(out_f32, ref, atol=1e-4, rtol=1e-4), "f32 mismatch vs reference"

    # Default fast path: bf16 MXU operands (cast once at prepare time), f32
    # accumulation + elementwise; per-call path has no pre-kernel XLA ops.
    params = prepare_gcn_params(adj, w1, w2, batch_size=B)
    out = jax.block_until_ready(gcn_forward(x, params))
    assert out.shape == (B, N, F_OUT)
    assert jnp.allclose(out, ref, rtol=5e-2, atol=1e-1), "bf16 mismatch vs reference"

    print("KERNEL_OK")
</pallas_src>

<mosaic_0001>
module attributes {stable_mosaic.version = 11 : i64} {
  func.func @_gcn_kernel(%arg0: memref<2x8x32xf32, #tpu.memory_space<vmem>>, %arg1: memref<8x8xf32, #tpu.memory_space<vmem>>, %arg2: memref<64x32xf32, #tpu.memory_space<vmem>>, %arg3: memref<32x128xf32, #tpu.memory_space<vmem>>, %arg4: memref<8x128xf32, #tpu.memory_space<vmem>>) attributes {dimension_semantics = [], scalar_prefetch = 0 : i64, scratch_operands = 0 : i64, tpu.core_type = #tpu.core_type<tc>} {
    %c0 = arith.constant 0 : index
    %c0_0 = arith.constant 0 : index
    %0 = vector.load %arg1[%c0, %c0_0] : memref<8x8xf32, #tpu.memory_space<vmem>>, vector<8x8xf32>
    %c0_1 = arith.constant 0 : index
    %c0_2 = arith.constant 0 : index
    %1 = vector.load %arg2[%c0_1, %c0_2] : memref<64x32xf32, #tpu.memory_space<vmem>>, vector<64x32xf32>
    %c0_3 = arith.constant 0 : index
    %c0_4 = arith.constant 0 : index
    %2 = vector.load %arg3[%c0_3, %c0_4] : memref<32x128xf32, #tpu.memory_space<vmem>>, vector<32x128xf32>
    %c0_5 = arith.constant 0 : index
    %c0_6 = arith.constant 0 : index
    %c0_7 = arith.constant 0 : index
    %3 = vector.load %arg0[%c0_5, %c0_6, %c0_7] : memref<2x8x32xf32, #tpu.memory_space<vmem>>, vector<1x8x32xf32>
    %4 = vector.shape_cast %3 : vector<1x8x32xf32> to vector<8x32xf32>
    %5 = vector.extract_strided_slice %1 {offsets = [0, 0], sizes = [32, 32], strides = [1, 1]} : vector<64x32xf32> to vector<32x32xf32>
    %cst = arith.constant dense<0.000000e+00> : vector<8x32xf32>
    %6 = tpu.matmul %4, %5, %cst {dimension_numbers = #tpu.dot_dimension_numbers<[1], [0], [0], [1], [0, 0, 1, 1], [], []>} : vector<8x32xf32>, vector<32x32xf32>, vector<8x32xf32> -> vector<8x32xf32>
    %c1 = arith.constant 1 : index
    %c0_8 = arith.constant 0 : index
    %c0_9 = arith.constant 0 : index
    %7 = vector.load %arg0[%c1, %c0_8, %c0_9] : memref<2x8x32xf32, #tpu.memory_space<vmem>>, vector<1x8x32xf32>
    %8 = vector.shape_cast %7 : vector<1x8x32xf32> to vector<8x32xf32>
    %9 = vector.extract_strided_slice %1 {offsets = [32, 0], sizes = [32, 32], strides = [1, 1]} : vector<64x32xf32> to vector<32x32xf32>
    %cst_10 = arith.constant dense<0.000000e+00> : vector<8x32xf32>
    %10 = tpu.matmul %8, %9, %cst_10 {dimension_numbers = #tpu.dot_dimension_numbers<[1], [0], [0], [1], [0, 0, 1, 1], [], []>} : vector<8x32xf32>, vector<32x32xf32>, vector<8x32xf32> -> vector<8x32xf32>
    %11 = arith.addf %6, %10 : vector<8x32xf32>
    %cst_11 = arith.constant dense<0.000000e+00> : vector<8x32xf32>
    %12 = tpu.matmul %0, %11, %cst_11 {dimension_numbers = #tpu.dot_dimension_numbers<[1], [0], [0], [1], [0, 0, 1, 1], [], []>} : vector<8x8xf32>, vector<8x32xf32>, vector<8x32xf32> -> vector<8x32xf32>
    %cst_12 = arith.constant 0.000000e+00 : f32
    %13 = vector.broadcast %cst_12 : f32 to vector<8x32xf32>
    %14 = arith.maximumf %12, %13 : vector<8x32xf32>
    %cst_13 = arith.constant dense<0.000000e+00> : vector<8x32xf32>
    %15 = tpu.matmul %0, %14, %cst_13 {dimension_numbers = #tpu.dot_dimension_numbers<[1], [0], [0], [1], [0, 0, 1, 1], [], []>} : vector<8x8xf32>, vector<8x32xf32>, vector<8x32xf32> -> vector<8x32xf32>
    %cst_14 = arith.constant dense<0.000000e+00> : vector<8x128xf32>
    %16 = tpu.matmul %15, %2, %cst_14 {dimension_numbers = #tpu.dot_dimension_numbers<[1], [0], [0], [1], [0, 0, 1, 1], [], []>} : vector<8x32xf32>, vector<32x128xf32>, vector<8x128xf32> -> vector<8x128xf32>
    %c0_15 = arith.constant 0 : index
    %c0_16 = arith.constant 0 : index
    %17 = vector.load %arg4[%c0_15, %c0_16] : memref<8x128xf32, #tpu.memory_space<vmem>>, vector<8x128xf32>
    tpu.vector_store %arg4[%c0_15, %c0_16], %16 {strides = array<i32>} : memref<8x128xf32, #tpu.memory_space<vmem>>, vector<8x128xf32>,
    return
  }
}

</mosaic_0001>

<llo_original>
// kernel: _gcn_forward_impl.1
$region0: #{_gcn_forward_impl.1}
  #allocation0 [shape = 'u32[]', space=smem, size = 0x4, offset = 0x4, fixed_abs, tag = 'smem constant byte address 0x4 - core index']
  #allocation1 [shape = 'u32[72,128]{1,0:T(1,128)}', space=vmem, size = 0x9000, scoped, tag = 'internal scratch']
  %s0 = inlined_call_operand.vmem [shape: f32[2,8,32], index: 0, kind: input, shape index: {}]
  %s1 = inlined_call_operand.vmem [shape: f32[8,8], index: 1, kind: input, shape index: {}]
  %s2 = inlined_call_operand.vmem [shape: f32[64,32], index: 2, kind: input, shape index: {}]
  %s3 = inlined_call_operand.vmem [shape: f32[32,128], index: 3, kind: input, shape index: {}]
  %s4 = inlined_call_operand.vmem [shape: f32[8,128], index: 4, kind: output, shape index: {}]
  %s5 = sld [smem:[#allocation0]]
  $region26: #{_gcn_forward_impl.1} parent=0
    _
  %s7 = ssub.s32 1, %s5
  %s8 = scalar_select 0, %s7, %s5
  // Predicated region
  $region2: #{_gcn_forward_impl.1} parent=0 // pred_check
    _
  $region3: #{_gcn_forward_impl.1} parent=0 // pred_check_branch
    %10 = sbr.rel (0) target = $region5
  $region4: #{_gcn_forward_impl.1} parent=0 // pred_region
    _
  $region5: #{_gcn_forward_impl.1} parent=0 // pred_fallthru
    _
  // Predicated region
  $region6: #{_gcn_forward_impl.1} parent=0 // pred_check
    _
  $region7: #{_gcn_forward_impl.1} parent=0 // pred_check_branch
    %12 = sbr.rel (0) target = $region9
  $region8: #{_gcn_forward_impl.1} parent=0 // pred_region
    _
  $region9: #{_gcn_forward_impl.1} parent=0 // pred_fallthru
    _
  // Predicated region
  $region10: #{_gcn_forward_impl.1} parent=0 // pred_check
    _
  $region11: #{_gcn_forward_impl.1} parent=0 // pred_check_branch
    %14 = sbr.rel (0) target = $region13
  $region12: #{_gcn_forward_impl.1} parent=0 // pred_region
    _
  $region13: #{_gcn_forward_impl.1} parent=0 // pred_fallthru
    _
  // Predicated region
  $region14: #{_gcn_forward_impl.1} parent=0 // pred_check
    _
  $region15: #{_gcn_forward_impl.1} parent=0 // pred_check_branch
    %16 = sbr.rel (0) target = $region17
  $region16: #{_gcn_forward_impl.1} parent=0 // pred_region
    _
  $region17: #{_gcn_forward_impl.1} parent=0 // pred_fallthru
    _
  %v17 = vld [vmem:[%s1] sm:$0xff]
  %v18 = vld [vmem:[%s2] sm:$0xff]
  %v19 = vld [vmem:[%s2 + $0x8] sm:$0xff]
  %v20 = vld [vmem:[%s2 + $0x10] sm:$0xff]
  %v21 = vld [vmem:[%s2 + $0x18] sm:$0xff]
  %v22 = vld [vmem:[%s2 + $0x20] sm:$0xff]
  %v23 = vld [vmem:[%s2 + $0x28] sm:$0xff]
  %v24 = vld [vmem:[%s2 + $0x30] sm:$0xff]
  %v25 = vld [vmem:[%s2 + $0x38] sm:$0xff]
  %v26 = vld [vmem:[%s3] sm:$0xff]
  %v27 = vld [vmem:[%s3 + $0x8] sm:$0xff]
  %v28 = vld [vmem:[%s3 + $0x10] sm:$0xff]
  %v29 = vld [vmem:[%s3 + $0x18] sm:$0xff]
  %v30 = vld [vmem:[%s0] sm:$0xff]
  %s31 = scalar_lea.vmem %s0, 8
  %v32 = vld [vmem:[%s31] sm:$0xff]
  %vm33 = vcmask 261120
  %v35 = vsel %vm33, %v32, 0
  %37 = vmatpush.msra.mxu0 0.0
  %38 = vmatpush.msra.mxu0 0.0
  %39 = vmatpush.msra.mxu0 0.0
  %40 = vmatpush.msra.mxu0 0.0
  %41 = vmatpush.msra.mxu0 0.0
  %42 = vmatpush.msra.mxu0 0.0
  %43 = vmatpush.msra.mxu0 0.0
  %44 = vmatpush.msra.mxu0 0.0
  %45 = vmatpush.msra.mxu0 0.0
  %46 = vmatpush.msra.mxu0 0.0
  %47 = vmatpush.msra.mxu0 0.0
  %48 = vmatpush.msra.mxu0 0.0
  %49 = vmatpush.msra.mxu0 %v25
  %50 = vmatpush.msra.mxu0 %v24
  %51 = vmatpush.msra.mxu0 %v23
  %52 = vmatpush.msra.mxu0 %v22
  %53 = vmatmul.f32.gmra.mxu0 %v35
  %v54 = vpop.f32.mrf.mxu0
  %v55 = vadd.f32 0.0, %v54
  %56 = vdwg.mxu0
  %v58 = vsel %vm33, %v30, 0
  %60 = vmatpush.msra.mxu0 0.0
  %61 = vmatpush.msra.mxu0 0.0
  %62 = vmatpush.msra.mxu0 0.0
  %63 = vmatpush.msra.mxu0 0.0
  %64 = vmatpush.msra.mxu0 0.0
  %65 = vmatpush.msra.mxu0 0.0
  %66 = vmatpush.msra.mxu0 0.0
  %67 = vmatpush.msra.mxu0 0.0
  %68 = vmatpush.msra.mxu0 0.0
  %69 = vmatpush.msra.mxu0 0.0
  %70 = vmatpush.msra.mxu0 0.0
  %71 = vmatpush.msra.mxu0 0.0
  %72 = vmatpush.msra.mxu0 %v21
  %73 = vmatpush.msra.mxu0 %v20
  %74 = vmatpush.msra.mxu0 %v19
  %75 = vmatpush.msra.mxu0 %v18
  %76 = vmatmul.f32.gmra.mxu0 %v58
  %v77 = vpop.f32.mrf.mxu0
  %v78 = vadd.f32 %v55, %v77
  %79 = vdwg.mxu0
  %vm80 = vcmask 64512
  %v82 = vsel %vm80, %v17, 0
  %84 = vmatpush.msra.mxu0 0.0
  %85 = vmatpush.msra.mxu0 0.0
  %86 = vmatpush.msra.mxu0 0.0
  %87 = vmatpush.msra.mxu0 0.0
  %88 = vmatpush.msra.mxu0 0.0
  %89 = vmatpush.msra.mxu0 0.0
  %90 = vmatpush.msra.mxu0 0.0
  %91 = vmatpush.msra.mxu0 0.0
  %92 = vmatpush.msra.mxu0 0.0
  %93 = vmatpush.msra.mxu0 0.0
  %94 = vmatpush.msra.mxu0 0.0
  %95 = vmatpush.msra.mxu0 0.0
  %96 = vmatpush.msra.mxu0 0.0
  %97 = vmatpush.msra.mxu0 0.0
  %98 = vmatpush.msra.mxu0 0.0
  %99 = vmatpush.msra.mxu0 %v78
  %100 = vmatmul.f32.gmra.mxu0 %v82
  %v101 = vpop.f32.mrf.mxu0
  %v102 = vadd.f32 0.0, %v101
  %103 = vdwg.mxu0
  %v104 = vmax.f32 %v102, 0.0
  %105 = vmatpush.msra.mxu0 0.0
  %106 = vmatpush.msra.mxu0 0.0
  %107 = vmatpush.msra.mxu0 0.0
  %108 = vmatpush.msra.mxu0 0.0
  %109 = vmatpush.msra.mxu0 0.0
  %110 = vmatpush.msra.mxu0 0.0
  %111 = vmatpush.msra.mxu0 0.0
  %112 = vmatpush.msra.mxu0 0.0
  %113 = vmatpush.msra.mxu0 0.0
  %114 = vmatpush.msra.mxu0 0.0
  %115 = vmatpush.msra.mxu0 0.0
  %116 = vmatpush.msra.mxu0 0.0
  %117 = vmatpush.msra.mxu0 0.0
  %118 = vmatpush.msra.mxu0 0.0
  %119 = vmatpush.msra.mxu0 0.0
  %120 = vmatpush.msra.mxu0 %v104
  %121 = vmatmul.f32.gmra.mxu0 %v82
  %v122 = vpop.f32.mrf.mxu0
  %v123 = vadd.f32 0.0, %v122
  %124 = vdwg.mxu0
  %v126 = vsel %vm33, %v123, 0
  %128 = vmatpush.msra.mxu0 0.0
  %129 = vmatpush.msra.mxu0 0.0
  %130 = vmatpush.msra.mxu0 0.0
  %131 = vmatpush.msra.mxu0 0.0
  %132 = vmatpush.msra.mxu0 0.0
  %133 = vmatpush.msra.mxu0 0.0
  %134 = vmatpush.msra.mxu0 0.0
  %135 = vmatpush.msra.mxu0 0.0
  %136 = vmatpush.msra.mxu0 0.0
  %137 = vmatpush.msra.mxu0 0.0
  %138 = vmatpush.msra.mxu0 0.0
  %139 = vmatpush.msra.mxu0 0.0
  %140 = vmatpush.msra.mxu0 %v29
  %141 = vmatpush.msra.mxu0 %v28
  %142 = vmatpush.msra.mxu0 %v27
  %143 = vmatpush.msra.mxu0 %v26
  %144 = vmatmul.f32.gmra.mxu0 %v126
  %v145 = vpop.f32.mrf.mxu0
  %v146 = vadd.f32 0.0, %v145
  %147 = vdwg.mxu0
  %148 = vst [vmem:[%s4] sm:$0xff] %v146
  // Predicated region
  $region18: #{_gcn_forward_impl.1} parent=0 // pred_check
    _
  $region19: #{_gcn_forward_impl.1} parent=0 // pred_check_branch
    %150 = sbr.rel (0) target = $region21
  $region20: #{_gcn_forward_impl.1} parent=0 // pred_region
    _
  $region21: #{_gcn_forward_impl.1} parent=0 // pred_fallthru
    _
  // Predicated region
  $region22: #{_gcn_forward_impl.1} parent=0 // pred_check
    _
  $region23: #{_gcn_forward_impl.1} parent=0 // pred_check_branch
    %152 = sbr.rel (0) target = $region25
  $region24: #{_gcn_forward_impl.1} parent=0 // pred_region
    _
  $region25: #{_gcn_forward_impl.1} parent=0 // pred_fallthru
    _

</llo_original>
